<compile_context>
chip_gen: v6e
topology: v6e:2x2x1
jax: 0.10.0
libtpu: 0.0.40
codegen_flags: <defaults>
</compile_context>

<pallas_src>
import functools
import math

import jax
import jax.numpy as jnp
from jax import lax
from jax.experimental import pallas as pl
from jax.experimental.pallas import tpu as pltpu


_INV_SQRT2 = 1.0 / math.sqrt(2.0)
_TANH_C = math.sqrt(2.0 / math.pi)


def _round_up(x, m):
    return ((x + m - 1) // m) * m


def _ffn_kernel(x_ref, w1_ref, w2t_ref, o_ref, acc_ref, *, resident, gelu_approx):
    # x_ref:   (tm, dim)        bf16 token tile (constant across the hidden axis)
    # w1_ref:  (Hb|1, th, dim)  bf16 W1 blocks, torch layout (hidden, dim) split on hidden
    # w2t_ref: (Hb|1, th, dim)  bf16 W2^T blocks (hidden, dim) split on hidden
    # o_ref:   (tm, dim)        output tile, written on the last hidden step
    # acc_ref: (tm, dim)        f32 accumulator, resident across the hidden axis
    j = pl.program_id(1)

    @pl.when(j == 0)
    def _init():
        acc_ref[...] = jnp.zeros_like(acc_ref)

    # Resident path: full weights live in VMEM; pick the hidden block with a
    # dynamic leading-axis index.  Streamed path: the BlockSpec already delivered
    # the j-th block, so index 0.
    blk = j if resident else 0
    w1 = w1_ref[blk]     # (th, dim)
    w2t = w2t_ref[blk]   # (th, dim)

    # h = x @ W1_block^T -> (tm, th), f32 accumulation on the MXU
    # (contract last dims of both operands -- the standard q.k^T pattern).
    h = lax.dot_general(
        x_ref[...], w1,
        dimension_numbers=(((1,), (1,)), ((), ())),
        preferred_element_type=jnp.float32,
    )

    if gelu_approx == "tanh":
        # tanh-approx GELU: the transcendental goes to the EUP slot (nearly free on
        # v6e/v7x where the VALU would otherwise bind after the DMA fix).
        g = 0.5 * h * (1.0 + jnp.tanh(_TANH_C * (h + 0.044715 * (h * h * h))))
    else:
        # Exact-erf GELU (matches torch.nn.GELU(approximate='none')).
        g = 0.5 * h * (1.0 + lax.erf(h * _INV_SQRT2))

    # acc += GELU(h) @ W2_block^T, expressed as a canonical (k-first RHS)
    # contraction against the pre-transposed W2^T block.
    acc_ref[...] += lax.dot_general(
        g.astype(w2t.dtype), w2t,
        dimension_numbers=(((1,), (0,)), ((), ())),
        preferred_element_type=jnp.float32,
    )

    @pl.when(j == pl.num_programs(1) - 1)
    def _finalize():
        o_ref[...] = acc_ref[...].astype(o_ref.dtype)


@functools.partial(
    jax.jit,
    static_argnames=("tm_target", "th_target", "gelu_approx", "weight_resident"),
)
def feed_forward(x, w1, w2, *, tm_target=None, th_target=512,
                 gelu_approx="tanh", weight_resident=None):
    """x: (B, S, dim); w1: (hidden, dim); w2: (dim, hidden).  Returns (B, S, dim).

    gelu_approx: "tanh" (default, EUP-friendly) or "erf" (exact nn.GELU()).
    weight_resident: None = auto (resident when weights fit the VMEM budget).
    """
    B, S, dim = x.shape
    hidden = w1.shape[0]
    assert w1.shape == (hidden, dim) and w2.shape == (dim, hidden)
    assert th_target % 128 == 0

    out_dtype = x.dtype
    out_isz = jnp.dtype(out_dtype).itemsize
    M = B * S

    # Hidden blocking: th multiple of 128 (lane tiling / MXU); pad hidden with zero
    # rows/cols if needed (zeros are exact no-ops through GELU and the second matmul).
    th = min(th_target, _round_up(hidden, 128))
    H_pad = _round_up(hidden, th)
    Hb = H_pad // th

    # VMEM budget: <= 80% of the physical per-core capacity (64 MiB fallback = v7x),
    # so vmem_limit_bytes can never exceed physical VMEM on any generation.
    try:
        vmem_cap = int(pltpu.get_tpu_info().vmem_capacity_bytes)
    except Exception:
        vmem_cap = 64 * 1024 * 1024
    vmem_budget = int(0.8 * vmem_cap)

    def vmem_estimate(tm, resident):
        # Assume double-buffering on every input (worst case, even for the
        # constant-index resident weights).
        w_rows = H_pad if resident else th
        wbytes = 2 * 2 * w_rows * dim * 2          # W1 + W2^T, bf16, x2 buffers
        xbytes = 2 * tm * dim * 2                  # bf16 x tile, x2 buffers
        obytes = 2 * tm * dim * out_isz            # out tile, x2 buffers
        accbytes = tm * dim * 4                    # f32 accumulator scratch
        tmpbytes = 2 * tm * th * (4 + 2)           # (tm, th) f32 h/g + bf16 cast headroom
        return wbytes + xbytes + obytes + accbytes + tmpbytes

    def pick_tm(target):
        t = min(target, _round_up(M, 16))
        return max(16, (t // 16) * 16)             # multiple of 16 (bf16 sublane packing)

    # Token tile targets: resident path only needs to feed the MXU well (512);
    # streamed path must clear the weight-stream break-even (~650 FLOPs/byte on
    # v6e -> 768; also above v7x's ~310 and v5e's ~240).
    if tm_target is None:
        tm_res_target, tm_str_target = 512, 768
    else:
        tm_res_target = tm_str_target = tm_target

    tm = pick_tm(tm_res_target)
    resident = weight_resident
    if resident is None:
        resident = vmem_estimate(tm, True) <= vmem_budget
    if not resident:
        tm = pick_tm(tm_str_target)
    # Shrink tm if the working set still exceeds the budget.
    while tm > 16 and vmem_estimate(tm, resident) > vmem_budget:
        tm = max(16, (tm // 2 // 16) * 16)

    M_pad = _round_up(M, tm)

    # --- Host-side prep (fused under jit; callers carrying bf16 weights pay ~nothing,
    # and under a jitted model with constant weights XLA hoists these). ---
    x2d = x.reshape(M, dim).astype(jnp.bfloat16)
    if M_pad != M:
        x2d = jnp.pad(x2d, ((0, M_pad - M), (0, 0)))

    w1b = w1.astype(jnp.bfloat16)          # (hidden, dim), torch layout (free reshape below)
    w2tb = w2.T.astype(jnp.bfloat16)       # (hidden, dim) = W2^T (one-time relayout, fused w/ cast)
    if H_pad != hidden:
        w1b = jnp.pad(w1b, ((0, H_pad - hidden), (0, 0)))
        w2tb = jnp.pad(w2tb, ((0, H_pad - hidden), (0, 0)))
    w1r = w1b.reshape(Hb, th, dim)
    w2tr = w2tb.reshape(Hb, th, dim)

    grid = (M_pad // tm, Hb)

    if resident:
        # Full weights resident in VMEM: constant index map -> DMA'd once per call.
        w1_spec = pl.BlockSpec((Hb, th, dim), lambda i, j: (0, 0, 0))
        w2_spec = pl.BlockSpec((Hb, th, dim), lambda i, j: (0, 0, 0))
    else:
        # Streamed hidden blocks (re-fetched once per token tile).
        w1_spec = pl.BlockSpec((1, th, dim), lambda i, j: (j, 0, 0))
        w2_spec = pl.BlockSpec((1, th, dim), lambda i, j: (j, 0, 0))

    weight_streams = 1 if resident else (M_pad // tm)
    cost = pl.CostEstimate(
        flops=int(4 * M_pad * dim * H_pad),              # two matmuls, 2 flops/MAC
        transcendentals=int(M_pad * H_pad),              # one tanh/erf per hidden element
        bytes_accessed=int(M_pad * dim * 2               # x read (bf16)
                           + M_pad * dim * out_isz       # out write
                           + weight_streams * 2 * H_pad * dim * 2),  # W1 + W2^T streams
    )

    vmem_limit = int(min(vmem_budget,
                         max(32 * 1024 * 1024, int(1.5 * vmem_estimate(tm, resident)))))

    kernel = functools.partial(_ffn_kernel, resident=resident, gelu_approx=gelu_approx)

    out2d = pl.pallas_call(
        kernel,
        out_shape=jax.ShapeDtypeStruct((M_pad, dim), out_dtype),
        grid_spec=pltpu.PrefetchScalarGridSpec(
            num_scalar_prefetch=0,
            grid=grid,
            in_specs=[
                pl.BlockSpec((tm, dim), lambda i, j: (i, 0)),   # x tile (constant in j)
                w1_spec,
                w2_spec,
            ],
            out_specs=pl.BlockSpec((tm, dim), lambda i, j: (i, 0)),
            scratch_shapes=[pltpu.VMEM((tm, dim), jnp.float32)],
        ),
        compiler_params=pltpu.CompilerParams(
            dimension_semantics=("parallel", "arbitrary"),   # token axis megacore-sharded
            vmem_limit_bytes=vmem_limit,
        ),
        cost_estimate=cost,
    )(x2d, w1r, w2tr)

    return out2d[:M].reshape(B, S, dim)


def feed_forward_ref(x, w1, w2):
    """Reference mirroring the kernel's bf16-operand / f32-accumulate numerics,
    with exact-erf GELU (torch.nn.GELU(approximate='none'))."""
    xb = x.astype(jnp.bfloat16).astype(jnp.float32)
    w1b = w1.astype(jnp.bfloat16).astype(jnp.float32)
    w2b = w2.astype(jnp.bfloat16).astype(jnp.float32)
    h = jnp.einsum("bsd,hd->bsh", xb, w1b)
    g = 0.5 * h * (1.0 + lax.erf(h * _INV_SQRT2))
    gb = g.astype(jnp.bfloat16).astype(jnp.float32)
    return jnp.einsum("bsh,dh->bsd", gb, w2b).astype(x.dtype)


def _make_inputs(B, S, DIM, HID, key):
    kx, k1, k2 = jax.random.split(key, 3)
    x = jax.random.normal(kx, (B, S, DIM), dtype=jnp.float32)
    # Deterministic Kaiming-uniform-like init (nn.Linear default scale)
    b1 = 1.0 / math.sqrt(DIM)
    b2 = 1.0 / math.sqrt(HID)
    w1 = jax.random.uniform(k1, (HID, DIM), jnp.float32, -b1, b1)
    w2 = jax.random.uniform(k2, (DIM, HID), jnp.float32, -b2, b2)
    return x, w1, w2


if __name__ == "__main__":
    k0, k1, _ = jax.random.split(jax.random.PRNGKey(0), 3)

    # 1) GPT-2-ish tiny config: batch=2, seq=8, dim=32, ffn_hidden=4*dim=128.
    #    Defaults: auto path (weight-resident) + tanh GELU.
    x, w1, w2 = _make_inputs(2, 8, 32, 128, k0)
    out = jax.block_until_ready(feed_forward(x, w1, w2))
    ref = feed_forward_ref(x, w1, w2)
    assert out.shape == (2, 8, 32)
    assert jnp.allclose(out, ref, atol=2e-2, rtol=2e-2), "mismatch (default path)"

    # 2) Multi-tile shapes, forced weight-resident path + exact-erf GELU
    #    (exercises dynamic hidden-block indexing and multiple token tiles).
    x, w1, w2 = _make_inputs(2, 40, 64, 256, k1)
    ref = feed_forward_ref(x, w1, w2)
    out = jax.block_until_ready(
        feed_forward(x, w1, w2, tm_target=32, th_target=128,
                     gelu_approx="erf", weight_resident=True))
    assert jnp.allclose(out, ref, atol=2e-2, rtol=2e-2), "mismatch (resident path)"

    # 3) Same shapes, forced streamed (hidden-blocked weights) fallback path.
    out = jax.block_until_ready(
        feed_forward(x, w1, w2, tm_target=32, th_target=128,
                     gelu_approx="erf", weight_resident=False))
    assert jnp.allclose(out, ref, atol=2e-2, rtol=2e-2), "mismatch (streamed path)"

    print("KERNEL_OK")
</pallas_src>

<mosaic_0001>
module attributes {stable_mosaic.version = 11 : i64} {
  func.func @_ffn_kernel(%arg0: i32, %arg1: i32, %arg2: memref<16x32xbf16, #tpu.memory_space<vmem>>, %arg3: memref<1x128x32xbf16, #tpu.memory_space<vmem>>, %arg4: memref<1x128x32xbf16, #tpu.memory_space<vmem>>, %arg5: memref<16x32xf32, #tpu.memory_space<vmem>>, %arg6: memref<16x32xf32, #tpu.memory_space<vmem>>) attributes {dimension_semantics = [#tpu.dimension_semantics<parallel>, #tpu.dimension_semantics<arbitrary>], iteration_bounds = array<i64: 1, 1>, scalar_prefetch = 0 : i64, scratch_operands = 1 : i64, tpu.core_type = #tpu.core_type<tc>, window_params = [{transform_indices = @transform_0, window_bounds = array<i64: 16, 32>}, {pipeline_mode = #tpu.pipeline_mode<synchronous>, transform_indices = @transform_1, window_bounds = array<i64: 1, 128, 32>}, {pipeline_mode = #tpu.pipeline_mode<synchronous>, transform_indices = @transform_2, window_bounds = array<i64: 1, 128, 32>}, {transform_indices = @transform_3, window_bounds = array<i64: 16, 32>}]} {
    %c0_i32 = arith.constant 0 : i32
    %0 = arith.cmpi eq, %arg1, %c0_i32 : i32
    %1 = arith.extui %0 : i1 to i32
    %c0_i32_0 = arith.constant 0 : i32
    %2 = arith.cmpi ne, %1, %c0_i32_0 : i32
    scf.if %2 {
      %cst_17 = arith.constant 0.000000e+00 : f32
      %32 = vector.broadcast %cst_17 : f32 to vector<16x32xf32>
      %c0_18 = arith.constant 0 : index
      %c0_19 = arith.constant 0 : index
      %33 = vector.load %arg6[%c0_18, %c0_19] : memref<16x32xf32, #tpu.memory_space<vmem>>, vector<16x32xf32>
      tpu.vector_store %arg6[%c0_18, %c0_19], %32 {strides = array<i32>} : memref<16x32xf32, #tpu.memory_space<vmem>>, vector<16x32xf32>,
    } else {
    }
    %3 = arith.index_cast %arg1 : i32 to index
    %c0 = arith.constant 0 : index
    %c0_1 = arith.constant 0 : index
    %4 = vector.load %arg3[%3, %c0, %c0_1] : memref<1x128x32xbf16, #tpu.memory_space<vmem>>, vector<1x128x32xbf16>
    %5 = vector.shape_cast %4 : vector<1x128x32xbf16> to vector<128x32xbf16>
    %6 = arith.index_cast %arg1 : i32 to index
    %c0_2 = arith.constant 0 : index
    %c0_3 = arith.constant 0 : index
    %7 = vector.load %arg4[%6, %c0_2, %c0_3] : memref<1x128x32xbf16, #tpu.memory_space<vmem>>, vector<1x128x32xbf16>
    %8 = vector.shape_cast %7 : vector<1x128x32xbf16> to vector<128x32xbf16>
    %c0_4 = arith.constant 0 : index
    %c0_5 = arith.constant 0 : index
    %9 = vector.load %arg2[%c0_4, %c0_5] : memref<16x32xbf16, #tpu.memory_space<vmem>>, vector<16x32xbf16>
    %cst = arith.constant dense<0.000000e+00> : vector<16x128xf32>
    %10 = tpu.matmul %9, %5, %cst {dimension_numbers = #tpu.dot_dimension_numbers<[1], [1], [0], [0], [0, 0, 1, 0], [], []>} : vector<16x32xbf16>, vector<128x32xbf16>, vector<16x128xf32> -> vector<16x128xf32>
    %cst_6 = arith.constant 5.000000e-01 : f32
    %11 = vector.broadcast %cst_6 : f32 to vector<16x128xf32>
    %12 = arith.mulf %11, %10 : vector<16x128xf32>
    %13 = arith.mulf %10, %10 : vector<16x128xf32>
    %14 = arith.mulf %13, %10 : vector<16x128xf32>
    %cst_7 = arith.constant 4.471500e-02 : f32
    %15 = vector.broadcast %cst_7 : f32 to vector<16x128xf32>
    %16 = arith.mulf %15, %14 : vector<16x128xf32>
    %17 = arith.addf %10, %16 : vector<16x128xf32>
    %cst_8 = arith.constant 0.797884583 : f32
    %18 = vector.broadcast %cst_8 : f32 to vector<16x128xf32>
    %19 = arith.mulf %18, %17 : vector<16x128xf32>
    %20 = math.tanh %19 : vector<16x128xf32>
    %cst_9 = arith.constant 1.000000e+00 : f32
    %21 = vector.broadcast %cst_9 : f32 to vector<16x128xf32>
    %22 = arith.addf %21, %20 : vector<16x128xf32>
    %23 = arith.mulf %12, %22 : vector<16x128xf32>
    %c0_10 = arith.constant 0 : index
    %c0_11 = arith.constant 0 : index
    %24 = vector.load %arg6[%c0_10, %c0_11] : memref<16x32xf32, #tpu.memory_space<vmem>>, vector<16x32xf32>
    %25 = arith.truncf %23 : vector<16x128xf32> to vector<16x128xbf16>
    %cst_12 = arith.constant dense<0.000000e+00> : vector<16x32xf32>
    %26 = tpu.matmul %25, %8, %cst_12 {dimension_numbers = #tpu.dot_dimension_numbers<[1], [0], [0], [1], [0, 0, 1, 1], [], []>} : vector<16x128xbf16>, vector<128x32xbf16>, vector<16x32xf32> -> vector<16x32xf32>
    %27 = arith.addf %24, %26 : vector<16x32xf32>
    %c0_13 = arith.constant 0 : index
    %c0_14 = arith.constant 0 : index
    %28 = vector.load %arg6[%c0_13, %c0_14] : memref<16x32xf32, #tpu.memory_space<vmem>>, vector<16x32xf32>
    tpu.vector_store %arg6[%c0_13, %c0_14], %27 {strides = array<i32>} : memref<16x32xf32, #tpu.memory_space<vmem>>, vector<16x32xf32>,
    %c0_i32_15 = arith.constant 0 : i32
    %29 = arith.cmpi eq, %arg1, %c0_i32_15 : i32
    %30 = arith.extui %29 : i1 to i32
    %c0_i32_16 = arith.constant 0 : i32
    %31 = arith.cmpi ne, %30, %c0_i32_16 : i32
    scf.if %31 {
      %c0_17 = arith.constant 0 : index
      %c0_18 = arith.constant 0 : index
      %32 = vector.load %arg6[%c0_17, %c0_18] : memref<16x32xf32, #tpu.memory_space<vmem>>, vector<16x32xf32>
      %c0_19 = arith.constant 0 : index
      %c0_20 = arith.constant 0 : index
      %33 = vector.load %arg5[%c0_19, %c0_20] : memref<16x32xf32, #tpu.memory_space<vmem>>, vector<16x32xf32>
      tpu.vector_store %arg5[%c0_19, %c0_20], %32 {strides = array<i32>} : memref<16x32xf32, #tpu.memory_space<vmem>>, vector<16x32xf32>,
    } else {
    }
    return
  }
  func.func @transform_0(%arg0: i32, %arg1: i32) -> (i32, i32) {
    %c0_i32 = arith.constant 0 : i32
    %c0_i32_0 = arith.constant 0 : i32
    return %arg0, %c0_i32 : i32, i32
  }
  func.func @transform_1(%arg0: i32, %arg1: i32) -> (i32, i32, i32) {
    %c0_i32 = arith.constant 0 : i32
    %c0_i32_0 = arith.constant 0 : i32
    %c0_i32_1 = arith.constant 0 : i32
    %c0_i32_2 = arith.constant 0 : i32
    return %c0_i32, %c0_i32_0, %c0_i32_1 : i32, i32, i32
  }
  func.func @transform_2(%arg0: i32, %arg1: i32) -> (i32, i32, i32) {
    %c0_i32 = arith.constant 0 : i32
    %c0_i32_0 = arith.constant 0 : i32
    %c0_i32_1 = arith.constant 0 : i32
    %c0_i32_2 = arith.constant 0 : i32
    return %c0_i32, %c0_i32_0, %c0_i32_1 : i32, i32, i32
  }
  func.func @transform_3(%arg0: i32, %arg1: i32) -> (i32, i32) {
    %c0_i32 = arith.constant 0 : i32
    %c0_i32_0 = arith.constant 0 : i32
    return %arg0, %c0_i32 : i32, i32
  }
}

</mosaic_0001>

<llo_original>
// kernel: feed_forward.1
$region0: #{feed_forward.1}
  #allocation0 [shape = 'u32[]', space=smem, size = 0x4, offset = 0x4, fixed_abs, tag = 'smem constant byte address 0x4 - core index']
  #allocation1 [shape = 'u32[144,128]{1,0:T(1,128)}', space=vmem, size = 0x12000, scoped, tag = 'internal scratch']
  #allocation2 [shape = 'f32[16,32]{1,0:T(8,128)}', space=vmem, size = 0x2000, scoped, tag = 'scratch operand']
  %s0 = inlined_call_operand.vmem [shape: bf16[16,32], index: 0, kind: input, shape index: {}]
  %s1 = inlined_call_operand.vmem [shape: bf16[1,128,32], index: 1, kind: input, shape index: {}]
  %s2 = inlined_call_operand.vmem [shape: bf16[1,128,32], index: 2, kind: input, shape index: {}]
  %s3 = inlined_call_operand.hbm [shape: f32[16,32], index: 3, kind: output, shape index: {}]
  %s4 = sld [smem:[#allocation0]]
  $region30: #{feed_forward.1} parent=0
    _
  %s6 = ssub.s32 1, %s4
  %s7 = scalar_select 0, %s6, %s4
  $region1: #{feed_forward.1} parent=0
    #allocation3 [shape = 'u8[8192]{0}', space=vmem, size = 0x2000, scoped, tag = 'output window, operand 0, single buffered']
    #allocation4 [shape = 's32[1]{0}', space=sflag, size = 0x4, scoped, tag = 'scoped memory for feed_forward.1']
    %8 = vsyncpa [#allocation4], 0
    // Predicated region
    $region2: #{feed_forward.1} parent=1 // pred_check
      _
    $region3: #{feed_forward.1} parent=1 // pred_check_branch
      %10 = sbr.rel (0) target = $region5
    $region4: #{feed_forward.1} parent=1 // pred_region
      _
    $region5: #{feed_forward.1} parent=1 // pred_fallthru
      _
    // Predicated region
    $region6: #{feed_forward.1} parent=1 // pred_check
      _
    $region7: #{feed_forward.1} parent=1 // pred_check_branch
      %12 = sbr.rel (0) target = $region9
    $region8: #{feed_forward.1} parent=1 // pred_region
      _
    $region9: #{feed_forward.1} parent=1 // pred_fallthru
      _
    // Predicated region
    $region10: #{feed_forward.1} parent=1 // pred_check
      _
    $region11: #{feed_forward.1} parent=1 // pred_check_branch
      %14 = sbr.rel (0) target = $region13
    $region12: #{feed_forward.1} parent=1 // pred_region
      _
    $region13: #{feed_forward.1} parent=1 // pred_fallthru
      _
    %p16 = scmp.eq.s32.totalorder 0, 0
    // Predicated region
    $region14: #{feed_forward.1} parent=1 // pred_check
      %p17 = pneg %p16
    $region15: #{feed_forward.1} parent=1 // pred_check_branch
      %19 = sbr.rel (%p17) target = $region17
    $region16: #{feed_forward.1} parent=1 // pred_region
      %vm20 = vcmask 261120
      %21 = vst.msk [vmem:[#allocation2] sm:$0xff] %vm20, 0.0
      %22 = vst.msk [vmem:[#allocation2 + $0x8] sm:$0xff] %vm20, 0.0
    $region17: #{feed_forward.1} parent=1 // pred_fallthru
      _
    %s23 = smul.u32 0, 16
    %s24 = smul.addr %s23, 4
    %s25 = scalar_lea.vmem %s1, %s24
    %v26 = vld [vmem:[%s25] sm:$0xf]
    %v27 = vld [vmem:[%s25 + $0x4] sm:$0xf]
    %v28 = vld [vmem:[%s25 + $0x8] sm:$0xf]
    %v29 = vld [vmem:[%s25 + $0xc] sm:$0xf]
    %v30 = vld [vmem:[%s25 + $0x10] sm:$0xf]
    %v31 = vld [vmem:[%s25 + $0x14] sm:$0xf]
    %v32 = vld [vmem:[%s25 + $0x18] sm:$0xf]
    %v33 = vld [vmem:[%s25 + $0x1c] sm:$0xf]
    %v34 = vld [vmem:[%s25 + $0x20] sm:$0xf]
    %v35 = vld [vmem:[%s25 + $0x24] sm:$0xf]
    %v36 = vld [vmem:[%s25 + $0x28] sm:$0xf]
    %v37 = vld [vmem:[%s25 + $0x2c] sm:$0xf]
    %v38 = vld [vmem:[%s25 + $0x30] sm:$0xf]
    %v39 = vld [vmem:[%s25 + $0x34] sm:$0xf]
    %v40 = vld [vmem:[%s25 + $0x38] sm:$0xf]
    %v41 = vld [vmem:[%s25 + $0x3c] sm:$0xf]
    %s42 = smul.addr %s23, 4
    %s43 = scalar_lea.vmem %s2, %s42
    %v44 = vld [vmem:[%s43] sm:$0xf]
    %v45 = vld [vmem:[%s43 + $0x4] sm:$0xf]
    %v46 = vld [vmem:[%s43 + $0x8] sm:$0xf]
    %v47 = vld [vmem:[%s43 + $0xc] sm:$0xf]
    %v48 = vld [vmem:[%s43 + $0x10] sm:$0xf]
    %v49 = vld [vmem:[%s43 + $0x14] sm:$0xf]
    %v50 = vld [vmem:[%s43 + $0x18] sm:$0xf]
    %v51 = vld [vmem:[%s43 + $0x1c] sm:$0xf]
    %v52 = vld [vmem:[%s43 + $0x20] sm:$0xf]
    %v53 = vld [vmem:[%s43 + $0x24] sm:$0xf]
    %v54 = vld [vmem:[%s43 + $0x28] sm:$0xf]
    %v55 = vld [vmem:[%s43 + $0x2c] sm:$0xf]
    %v56 = vld [vmem:[%s43 + $0x30] sm:$0xf]
    %v57 = vld [vmem:[%s43 + $0x34] sm:$0xf]
    %v58 = vld [vmem:[%s43 + $0x38] sm:$0xf]
    %v59 = vld [vmem:[%s43 + $0x3c] sm:$0xf]
    %v60 = vld [vmem:[%s0] sm:$0xf]
    %v61 = vld [vmem:[%s0 + $0x4] sm:$0xf]
    %v64 = vunpack.c.l.b16 %v60
    %v65 = vunpack.c.l.b16 %v61
    %v66 = vpack.c.b16 %v65, %v64
    %v83 = vunpack.c.l.b16 %v26
    %v84 = vunpack.c.l.b16 %v27
    %v85 = vunpack.c.l.b16 %v28
    %v86 = vunpack.c.l.b16 %v29
    %v87 = vunpack.c.l.b16 %v30
    %v88 = vunpack.c.l.b16 %v31
    %v89 = vunpack.c.l.b16 %v32
    %v90 = vunpack.c.l.b16 %v33
    %v91 = vunpack.c.l.b16 %v34
    %v92 = vunpack.c.l.b16 %v35
    %v93 = vunpack.c.l.b16 %v36
    %v94 = vunpack.c.l.b16 %v37
    %v95 = vunpack.c.l.b16 %v38
    %v96 = vunpack.c.l.b16 %v39
    %v97 = vunpack.c.l.b16 %v40
    %v98 = vunpack.c.l.b16 %v41
    %v99 = vpack.c.b16 %v84, %v83
    %v100 = vpack.c.b16 %v86, %v85
    %v101 = vpack.c.b16 %v88, %v87
    %v102 = vpack.c.b16 %v90, %v89
    %v103 = vpack.c.b16 %v92, %v91
    %v104 = vpack.c.b16 %v94, %v93
    %v105 = vpack.c.b16 %v96, %v95
    %v106 = vpack.c.b16 %v98, %v97
    %vm107 = vcmask 261120
    %v109 = vsel %vm107, %v66, 0
    %v112 = vsel %vm107, %v99, 0
    %v115 = vsel %vm107, %v100, 0
    %v118 = vsel %vm107, %v101, 0
    %v121 = vsel %vm107, %v102, 0
    %v124 = vsel %vm107, %v103, 0
    %v127 = vsel %vm107, %v104, 0
    %v130 = vsel %vm107, %v105, 0
    %v133 = vsel %vm107, %v106, 0
    %135 = vmatprep.subr.bf16.mxu0 0
    %136 = vmatpush1.bf16.xpose.msra.mxu0 %v133
    %137 = vmatprep.subr.bf16.mxu0 0
    %138 = vmatpush1.bf16.xpose.msra.mxu0 %v130
    %139 = vmatprep.subr.bf16.mxu0 0
    %140 = vmatpush1.bf16.xpose.msra.mxu0 %v127
    %141 = vmatprep.subr.bf16.mxu0 0
    %142 = vmatpush1.bf16.xpose.msra.mxu0 %v124
    %143 = vmatprep.subr.bf16.mxu0 0
    %144 = vmatpush1.bf16.xpose.msra.mxu0 %v121
    %145 = vmatprep.subr.bf16.mxu0 0
    %146 = vmatpush1.bf16.xpose.msra.mxu0 %v118
    %147 = vmatprep.subr.bf16.mxu0 0
    %148 = vmatpush1.bf16.xpose.msra.mxu0 %v115
    %149 = vmatprep.subr.bf16.mxu0 0
    %150 = vmatpush1.bf16.xpose.msra.mxu0 %v112
    %151 = vmatprep.subr.bf16.mxu0 0
    %152 = vmatpush2.bf16.xpose.msra.mxu0 0
    %153 = vmatprep.subr.bf16.mxu0 0
    %154 = vmatpush2.bf16.xpose.msra.mxu0 0
    %155 = vmatprep.subr.bf16.mxu0 0
    %156 = vmatpush2.bf16.xpose.msra.mxu0 0
    %157 = vmatprep.subr.bf16.mxu0 0
    %158 = vmatpush2.bf16.xpose.msra.mxu0 0
    %159 = vmatprep.subr.bf16.mxu0 0
    %160 = vmatpush2.bf16.xpose.msra.mxu0 0
    %161 = vmatprep.subr.bf16.mxu0 0
    %162 = vmatpush2.bf16.xpose.msra.mxu0 0
    %163 = vmatprep.subr.bf16.mxu0 0
    %164 = vmatpush2.bf16.xpose.msra.mxu0 0
    %165 = vmatprep.subr.bf16.mxu0 0
    %166 = vmatpush2.bf16.xpose.msra.mxu0 0
    %167 = vmatprep.mubr.bf16.mxu0 0
    %168 = vmatmul.mubr.bf16.gmra.mxu0 %v109
    %v169 = vpop.f32.mrf.mxu0
    %v170 = vadd.f32 0.0, %v169
    %v171 = vpop.f32.mrf.mxu0
    %v172 = vpop.f32.mrf.mxu0
    %v173 = vadd.f32 0.0, %v172
    %v174 = vpop.f32.mrf.mxu0
    %175 = vdwg.mxu0
    %v176 = vmul.f32 %v170, 0.5
    %v177 = vmul.f32 %v173, 0.5
    %v178 = vmul.f32 %v170, %v170
    %v179 = vmul.f32 %v173, %v173
    %v180 = vmul.f32 %v178, %v170
    %v181 = vmul.f32 %v179, %v173
    %v182 = vmul.f32 %v180, 0.044715
    %v183 = vmul.f32 %v181, 0.044715
    %v184 = vadd.f32 %v170, %v182
    %v185 = vadd.f32 %v173, %v183
    %v186 = vmul.f32 %v184, 0.7978846
    %v187 = vmul.f32 %v185, 0.7978846
    %v188 = vtanh.pop %v186
    %v189 = vtanh.pop %v187
    %v190 = vadd.f32 %v188, 1.0
    %v191 = vadd.f32 %v189, 1.0
    %v192 = vmul.f32 %v176, %v190
    %v193 = vmul.f32 %v177, %v191
    %v194 = vld [vmem:[#allocation2] sm:$0xff]
    %v195 = vld [vmem:[#allocation2 + $0x8] sm:$0xff]
    %v196 = vpack.c.bf16 %v193, %v192
    %v213 = vunpack.c.l.b16 %v44
    %v214 = vunpack.c.l.b16 %v45
    %v215 = vunpack.c.l.b16 %v46
    %v216 = vunpack.c.l.b16 %v47
    %v217 = vunpack.c.l.b16 %v48
    %v218 = vunpack.c.l.b16 %v49
    %v219 = vunpack.c.l.b16 %v50
    %v220 = vunpack.c.l.b16 %v51
    %v221 = vunpack.c.l.b16 %v52
    %v222 = vunpack.c.l.b16 %v53
    %v223 = vunpack.c.l.b16 %v54
    %v224 = vunpack.c.l.b16 %v55
    %v225 = vunpack.c.l.b16 %v56
    %v226 = vunpack.c.l.b16 %v57
    %v227 = vunpack.c.l.b16 %v58
    %v228 = vunpack.c.l.b16 %v59
    %v229 = vpack.c.b16 %v214, %v213
    %v230 = vpack.c.b16 %v216, %v215
    %v231 = vpack.c.b16 %v218, %v217
    %v232 = vpack.c.b16 %v220, %v219
    %v233 = vpack.c.b16 %v222, %v221
    %v234 = vpack.c.b16 %v224, %v223
    %v235 = vpack.c.b16 %v226, %v225
    %v236 = vpack.c.b16 %v228, %v227
    %245 = vmatprep.subr.bf16.mxu0 0
    %246 = vmatpush1.bf16.msra.mxu0 %v236
    %247 = vmatprep.subr.bf16.mxu0 0
    %248 = vmatpush1.bf16.msra.mxu0 %v235
    %249 = vmatprep.subr.bf16.mxu0 0
    %250 = vmatpush1.bf16.msra.mxu0 %v234
    %251 = vmatprep.subr.bf16.mxu0 0
    %252 = vmatpush1.bf16.msra.mxu0 %v233
    %253 = vmatprep.subr.bf16.mxu0 0
    %254 = vmatpush1.bf16.msra.mxu0 %v232
    %255 = vmatprep.subr.bf16.mxu0 0
    %256 = vmatpush1.bf16.msra.mxu0 %v231
    %257 = vmatprep.subr.bf16.mxu0 0
    %258 = vmatpush1.bf16.msra.mxu0 %v230
    %259 = vmatprep.subr.bf16.mxu0 0
    %260 = vmatpush1.bf16.msra.mxu0 %v229
    %261 = vmatprep.subr.bf16.mxu0 0
    %262 = vmatpush2.bf16.msra.mxu0 0
    %263 = vmatprep.subr.bf16.mxu0 0
    %264 = vmatpush2.bf16.msra.mxu0 0
    %265 = vmatprep.subr.bf16.mxu0 0
    %266 = vmatpush2.bf16.msra.mxu0 0
    %267 = vmatprep.subr.bf16.mxu0 0
    %268 = vmatpush2.bf16.msra.mxu0 0
    %269 = vmatprep.subr.bf16.mxu0 0
    %270 = vmatpush2.bf16.msra.mxu0 0
    %271 = vmatprep.subr.bf16.mxu0 0
    %272 = vmatpush2.bf16.msra.mxu0 0
    %273 = vmatprep.subr.bf16.mxu0 0
    %274 = vmatpush2.bf16.msra.mxu0 0
    %275 = vmatprep.subr.bf16.mxu0 0
    %276 = vmatpush2.bf16.msra.mxu0 0
    %277 = vmatprep.mubr.bf16.mxu0 0
    %278 = vmatmul.mubr.bf16.gmra.mxu0 %v196
    %v279 = vpop.f32.mrf.mxu0
    %v280 = vadd.f32 0.0, %v279
    %v281 = vpop.f32.mrf.mxu0
    %v282 = vpop.f32.mrf.mxu0
    %v283 = vadd.f32 0.0, %v282
    %v284 = vpop.f32.mrf.mxu0
    %285 = vdwg.mxu0
    %v286 = vadd.f32 %v194, %v280
    %v287 = vadd.f32 %v195, %v283
    %288 = vst.msk [vmem:[#allocation2] sm:$0xff] %vm107, %v286
    %289 = vst.msk [vmem:[#allocation2 + $0x8] sm:$0xff] %vm107, %v287
    // Predicated region
    $region18: #{feed_forward.1} parent=1 // pred_check
      %p290 = pneg %p16
    $region19: #{feed_forward.1} parent=1 // pred_check_branch
      %292 = sbr.rel (%p290) target = $region21
    $region20: #{feed_forward.1} parent=1 // pred_region
      %v293 = vld [vmem:[#allocation2] sm:$0xff]
      %v294 = vld [vmem:[#allocation2 + $0x8] sm:$0xff]
      %295 = vst.msk [vmem:[#allocation3] sm:$0xff] %vm107, %v293
      %296 = vst.msk [vmem:[#allocation3 + $0x8] sm:$0xff] %vm107, %v294
    $region21: #{feed_forward.1} parent=1 // pred_fallthru
      _
    // Predicated region
    $region22: #{feed_forward.1} parent=1 // pred_check
      _
    $region23: #{feed_forward.1} parent=1 // pred_check_branch
      %298 = sbr.rel (0) target = $region25
    $region24: #{feed_forward.1} parent=1 // pred_region
      %s300 = ssub.s32 256, 256
      %301 = vsyncadd [#allocation4], %s300
      %s302 = sshll.u32 [#allocation3], 4
      %s303 = int_to_ptr.vmem [resolvable:$true] %s302
      %308 = dma.vmem_to_hbm [thread:$0]  %s303, 256, %s3, [#allocation4], 128, 128, 8
    $region25: #{feed_forward.1} parent=1 // pred_fallthru
      _
    // Predicated region
    $region26: #{feed_forward.1} parent=1 // pred_check
      _
    $region27: #{feed_forward.1} parent=1 // pred_check_branch
      %310 = sbr.rel (0) target = $region29
    $region28: #{feed_forward.1} parent=1 // pred_region
      %311 = dma.done [#allocation4], 256
    $region29: #{feed_forward.1} parent=1 // pred_fallthru
      _
    %312 = vsyncpa [#allocation4], 1

</llo_original>
